<compile_context>
chip_gen: v5e
topology: v5e:2x2
jax: 0.10.0
libtpu: 0.0.40
codegen_flags: <defaults>
</compile_context>

<pallas_src>
import math

import jax
import jax.numpy as jnp
from jax.experimental import pallas as pl
from jax.experimental.pallas import tpu as pltpu


def _round_up(x, m):
    return ((x + m - 1) // m) * m


def _make_concat_pooling_kernel(n_inputs, feat_dims, compute_dtype):
    """refs = (x_0..x_{n-1}, w, bias, out, x_cat_scratch)."""
    offs = [0]
    for f in feat_dims:
        offs.append(offs[-1] + f)

    def kernel(*refs):
        x_refs = refs[:n_inputs]
        w_ref, b_ref, o_ref, x_cat = refs[n_inputs:n_inputs + 4]
        # Fused concat + in-kernel dtype cast: stage the per-input row tiles
        # into one wide VMEM slab (cheap VPU/vst work that hides under the
        # MXU), so the matmul is a single full-K dot on compute-dtype operands.
        for i in range(n_inputs):
            x_cat[:, offs[i]:offs[i + 1]] = x_refs[i][...].astype(compute_dtype)
        acc = jnp.dot(x_cat[...], w_ref[...], preferred_element_type=jnp.float32)
        o_ref[...] = (acc + b_ref[...]).astype(o_ref.dtype)

    return kernel


def concat_pooling(inputs, weight, bias, *, compute_dtype=None, use_pallas=None):
    """ConcatPooling forward: Linear(concat(inputs, -1)).

    inputs: tuple of arrays sharing leading dims, concatenated on last axis.
    weight: (output_dim, input_dim)  (PyTorch nn.Linear convention)
    bias:   (output_dim,)
    compute_dtype: MXU operand dtype (default bf16 for f32/bf16 inputs);
                   accumulation and bias add are always f32.
    """
    if len(inputs) not in (2, 4, 6, 8):
        raise ValueError("Supported number: 2, 4, 6, 8")

    lead_shape = inputs[0].shape[:-1]
    for x in inputs:
        if x.shape[:-1] != lead_shape:
            raise ValueError("All inputs must share leading dims")

    feat_dims = [int(x.shape[-1]) for x in inputs]
    input_dim = sum(feat_dims)
    output_dim = int(weight.shape[0])
    assert weight.shape == (output_dim, input_dim)
    assert bias.shape == (output_dim,)
    out_dtype = inputs[0].dtype
    M = int(math.prod(lead_shape)) if lead_shape else 1

    if use_pallas is None:
        # Tiny problems are dominated by launch/pipeline overhead; let XLA fuse.
        use_pallas = M * input_dim >= (1 << 16)
    if not use_pallas:
        x = jnp.concatenate(inputs, axis=-1)
        return (x @ weight.T + bias).astype(out_dtype)

    if compute_dtype is None:
        compute_dtype = (jnp.bfloat16
                         if jnp.dtype(out_dtype) in (jnp.dtype(jnp.float32),
                                                     jnp.dtype(jnp.bfloat16))
                         else out_dtype)
    compute_dtype = jnp.dtype(compute_dtype)

    in_bytes = jnp.dtype(out_dtype).itemsize     # inputs stream in their own dtype
    c_bytes = compute_dtype.itemsize
    o_bytes = jnp.dtype(out_dtype).itemsize

    # Parameter prep: one pass over W (transpose + cast).  For repeated
    # forward calls with static weights, hoist/cache these two arrays.
    w_t = jnp.asarray(weight).T.astype(compute_dtype)          # (input_dim, output_dim)
    b2d = jnp.asarray(bias).astype(jnp.float32).reshape(1, output_dim)

    # Flatten leading dims; NO wrapper-side cast of X (cast happens in-kernel).
    xs = [x.reshape(M, f) for x, f in zip(inputs, feat_dims)]

    # ---- Generation-aware VMEM budget (64 MiB v7x, 128 MiB v5e/v6e). ----
    try:
        cap = int(pltpu.get_tpu_info().vmem_capacity_bytes)
    except Exception:
        cap = 64 << 20                                          # safe on all gens
    budget = int(cap * 0.6)

    def resident_bytes(tn):
        # W stripe + f32 bias row; counted double-buffered so the budget stays
        # valid even if the Buffered(1) request is not honored.
        return 2 * input_dim * tn * c_bytes + 2 * 8 * tn * 4

    # N (output-column) stripe: full width if resident W fits, else 128-multiple
    # stripes.  Unaligned output_dim -> full width (masked stores, but no
    # padding and no post-kernel slice pass).
    if output_dim % 128 == 0:
        cands = [output_dim] + [t for t in (1024, 512, 256, 128) if t < output_dim]
    else:
        cands = [output_dim]
    tn = cands[-1]
    for c in cands:
        if resident_bytes(c) <= budget // 2:
            tn = c
            break
    grid_n = -(-output_dim // tn)

    # ---- Row tile sizing (includes staging slab and f32 accumulator). ----
    row_align = 16 if c_bytes < 4 else 8
    per_row = (2 * input_dim * in_bytes        # double-buffered X tiles
               + input_dim * c_bytes           # staging slab
               + 2 * tn * o_bytes              # double-buffered OUT tile
               + 2 * tn * 4)                   # f32 accumulator / dot result temp
    tm = (budget - resident_bytes(tn)) // per_row
    tm = max(row_align, min(int(tm), 1024))    # >=~85% of HBM roofline by 512-1024 rows
    if M >= 4 * row_align:
        tm = min(tm, _round_up(-(-M // 4), row_align))   # prefer >=4 row steps
    tm = min(tm, _round_up(M, row_align))
    tm = max(row_align, (tm // row_align) * row_align)
    grid_m = -(-M // tm)

    vmem_need = resident_bytes(tn) + per_row * tm
    vmem_limit = int(min(cap - (12 << 20), max(vmem_need + (8 << 20), 32 << 20)))

    kernel = _make_concat_pooling_kernel(len(inputs), feat_dims, compute_dtype)

    cost = pl.CostEstimate(
        flops=2 * M * input_dim * output_dim,
        transcendentals=0,
        bytes_accessed=(grid_n * M * input_dim * in_bytes
                        + input_dim * output_dim * c_bytes
                        + M * output_dim * o_bytes
                        + output_dim * 4),
    )

    def build_call(single_buffer_resident):
        res_kw = dict(pipeline_mode=pl.Buffered(1)) if single_buffer_resident else {}
        in_specs = (
            [pl.BlockSpec((tm, f), lambda j, i: (i, 0)) for f in feat_dims]   # X tiles
            + [pl.BlockSpec((input_dim, tn), lambda j, i: (0, j), **res_kw),  # W stripe
               pl.BlockSpec((1, tn), lambda j, i: (0, j), **res_kw)]          # bias stripe
        )
        return pl.pallas_call(
            kernel,
            out_shape=jax.ShapeDtypeStruct((M, output_dim), out_dtype),
            grid=(grid_n, grid_m),            # W/bias resident across the inner M loop
            in_specs=in_specs,
            out_specs=pl.BlockSpec((tm, tn), lambda j, i: (i, j)),
            scratch_shapes=[pltpu.VMEM((tm, input_dim), compute_dtype)],
            compiler_params=pltpu.CompilerParams(
                dimension_semantics=("parallel", "parallel"),   # megacore on either axis
                vmem_limit_bytes=vmem_limit,
            ),
            cost_estimate=cost,
        )

    args = (*xs, w_t, b2d)
    try:
        out2d = build_call(True)(*args)
    except Exception:
        # pipeline_mode=pl.Buffered(1) (single-buffered resident W/bias) is not
        # supported on this jax version; default double-buffering still fits the
        # conservative budget above.
        out2d = build_call(False)(*args)

    return out2d.reshape(*lead_shape, output_dim)


if __name__ == "__main__":
    key = jax.random.PRNGKey(0)
    k_in0, k_in1, k_w, k_b = jax.random.split(key, 4)

    # Small shapes: 2 inputs of [batch=2, seq=8, hidden=32] -> input_dim=64.
    batch, seq, hidden = 2, 8, 32
    output_dim = 32
    input_dim = 2 * hidden

    x0 = jax.random.normal(k_in0, (batch, seq, hidden), dtype=jnp.float32)
    x1 = jax.random.normal(k_in1, (batch, seq, hidden), dtype=jnp.float32)
    weight = jax.random.normal(k_w, (output_dim, input_dim), dtype=jnp.float32) * 0.05
    bias = jax.random.normal(k_b, (output_dim,), dtype=jnp.float32) * 0.05

    ref = jnp.concatenate((x0, x1), axis=-1) @ weight.T + bias

    # Default path (bf16 MXU operands, f32 accumulation) -> dtype-aware tolerance.
    out_bf16 = jax.block_until_ready(
        concat_pooling((x0, x1), weight, bias, use_pallas=True))
    assert out_bf16.shape == (batch, seq, output_dim)
    assert jnp.allclose(out_bf16, ref, atol=5e-2, rtol=5e-2)

    # Full-precision path for a tight numerical check of the same kernel.
    out_f32 = jax.block_until_ready(
        concat_pooling((x0, x1), weight, bias,
                       compute_dtype=jnp.float32, use_pallas=True))
    assert out_f32.shape == (batch, seq, output_dim)
    assert jnp.allclose(out_f32, ref, atol=1e-5, rtol=1e-5)

    print("KERNEL_OK")
</pallas_src>

<mosaic_0001>
module attributes {stable_mosaic.version = 11 : i64} {
  func.func @kernel(%arg0: i32, %arg1: i32, %arg2: memref<16x32xf32, #tpu.memory_space<vmem>>, %arg3: memref<16x32xf32, #tpu.memory_space<vmem>>, %arg4: memref<64x32xbf16, #tpu.memory_space<vmem>>, %arg5: memref<1x32xf32, #tpu.memory_space<vmem>>, %arg6: memref<16x32xf32, #tpu.memory_space<vmem>>, %arg7: memref<16x64xbf16, #tpu.memory_space<vmem>>) attributes {dimension_semantics = [#tpu.dimension_semantics<parallel>, #tpu.dimension_semantics<parallel>], iteration_bounds = array<i64: 1, 1>, scalar_prefetch = 0 : i64, scratch_operands = 1 : i64, tpu.core_type = #tpu.core_type<tc>, window_params = [{transform_indices = @transform_0, window_bounds = array<i64: 16, 32>}, {transform_indices = @transform_1, window_bounds = array<i64: 16, 32>}, {pipeline_mode = #tpu.pipeline_mode<synchronous>, transform_indices = @transform_2, window_bounds = array<i64: 64, 32>}, {pipeline_mode = #tpu.pipeline_mode<synchronous>, transform_indices = @transform_3, window_bounds = array<i64: 1, 32>}, {transform_indices = @transform_4, window_bounds = array<i64: 16, 32>}]} {
    %c0 = arith.constant 0 : index
    %c0_0 = arith.constant 0 : index
    %0 = vector.load %arg2[%c0, %c0_0] : memref<16x32xf32, #tpu.memory_space<vmem>>, vector<16x32xf32>
    %1 = arith.truncf %0 : vector<16x32xf32> to vector<16x32xbf16>
    %c0_1 = arith.constant 0 : index
    %c0_2 = arith.constant 0 : index
    %2 = vector.load %arg7[%c0_1, %c0_2] : memref<16x64xbf16, #tpu.memory_space<vmem>>, vector<16x32xbf16>
    tpu.vector_store %arg7[%c0_1, %c0_2], %1 {strides = array<i32>} : memref<16x64xbf16, #tpu.memory_space<vmem>>, vector<16x32xbf16>,
    %c0_3 = arith.constant 0 : index
    %c0_4 = arith.constant 0 : index
    %3 = vector.load %arg3[%c0_3, %c0_4] : memref<16x32xf32, #tpu.memory_space<vmem>>, vector<16x32xf32>
    %4 = arith.truncf %3 : vector<16x32xf32> to vector<16x32xbf16>
    %c0_5 = arith.constant 0 : index
    %c32 = arith.constant 32 : index
    %5 = vector.load %arg7[%c0_5, %c32] : memref<16x64xbf16, #tpu.memory_space<vmem>>, vector<16x32xbf16>
    tpu.vector_store %arg7[%c0_5, %c32], %4 {strides = array<i32>} : memref<16x64xbf16, #tpu.memory_space<vmem>>, vector<16x32xbf16>,
    %c0_6 = arith.constant 0 : index
    %c0_7 = arith.constant 0 : index
    %6 = vector.load %arg7[%c0_6, %c0_7] : memref<16x64xbf16, #tpu.memory_space<vmem>>, vector<16x64xbf16>
    %c0_8 = arith.constant 0 : index
    %c0_9 = arith.constant 0 : index
    %7 = vector.load %arg4[%c0_8, %c0_9] : memref<64x32xbf16, #tpu.memory_space<vmem>>, vector<64x32xbf16>
    %cst = arith.constant dense<0.000000e+00> : vector<16x32xf32>
    %8 = tpu.matmul %6, %7, %cst {dimension_numbers = #tpu.dot_dimension_numbers<[1], [0], [0], [1], [0, 0, 1, 1], [], []>} : vector<16x64xbf16>, vector<64x32xbf16>, vector<16x32xf32> -> vector<16x32xf32>
    %c0_10 = arith.constant 0 : index
    %c0_11 = arith.constant 0 : index
    %9 = vector.load %arg5[%c0_10, %c0_11] : memref<1x32xf32, #tpu.memory_space<vmem>>, vector<1x32xf32>
    %10 = vector.broadcast %9 : vector<1x32xf32> to vector<16x32xf32>
    %11 = arith.addf %8, %10 : vector<16x32xf32>
    %c0_12 = arith.constant 0 : index
    %c0_13 = arith.constant 0 : index
    %12 = vector.load %arg6[%c0_12, %c0_13] : memref<16x32xf32, #tpu.memory_space<vmem>>, vector<16x32xf32>
    tpu.vector_store %arg6[%c0_12, %c0_13], %11 {strides = array<i32>} : memref<16x32xf32, #tpu.memory_space<vmem>>, vector<16x32xf32>,
    return
  }
  func.func @transform_0(%arg0: i32, %arg1: i32) -> (i32, i32) {
    %c0_i32 = arith.constant 0 : i32
    %c0_i32_0 = arith.constant 0 : i32
    return %arg1, %c0_i32 : i32, i32
  }
  func.func @transform_1(%arg0: i32, %arg1: i32) -> (i32, i32) {
    %c0_i32 = arith.constant 0 : i32
    %c0_i32_0 = arith.constant 0 : i32
    return %arg1, %c0_i32 : i32, i32
  }
  func.func @transform_2(%arg0: i32, %arg1: i32) -> (i32, i32) {
    %c0_i32 = arith.constant 0 : i32
    %c0_i32_0 = arith.constant 0 : i32
    return %c0_i32, %arg0 : i32, i32
  }
  func.func @transform_3(%arg0: i32, %arg1: i32) -> (i32, i32) {
    %c0_i32 = arith.constant 0 : i32
    %c0_i32_0 = arith.constant 0 : i32
    return %c0_i32, %arg0 : i32, i32
  }
  func.func @transform_4(%arg0: i32, %arg1: i32) -> (i32, i32) {
    %c0_i32 = arith.constant 0 : i32
    return %arg1, %arg0 : i32, i32
  }
}

module attributes {stable_mosaic.version = 11 : i64} {
  func.func @kernel(%arg0: i32, %arg1: i32, %arg2: memref<16x32xf32, #tpu.memory_space<vmem>>, %arg3: memref<16x32xf32, #tpu.memory_space<vmem>>, %arg4: memref<64x32xbf16, #tpu.memory_space<vmem>>, %arg5: memref<1x32xf32, #tpu.memory_space<vmem>>, %arg6: memref<16x32xf32, #tpu.memory_space<vmem>>, %arg7: memref<16x64xbf16, #tpu.memory_space<vmem>>) attributes {dimension_semantics = [#tpu.dimension_semantics<parallel>, #tpu.dimension_semantics<parallel>], iteration_bounds = array<i64: 1, 1>, scalar_prefetch = 0 : i64, scratch_operands = 1 : i64, tpu.core_type = #tpu.core_type<tc>, window_params = [{transform_indices = @transform_0, window_bounds = array<i64: 16, 32>}, {transform_indices = @transform_1, window_bounds = array<i64: 16, 32>}, {transform_indices = @transform_2, window_bounds = array<i64: 64, 32>}, {transform_indices = @transform_3, window_bounds = array<i64: 1, 32>}, {transform_indices = @transform_4, window_bounds = array<i64: 16, 32>}]} {
    %c0 = arith.constant 0 : index
    %c0_0 = arith.constant 0 : index
    %0 = vector.load %arg2[%c0, %c0_0] : memref<16x32xf32, #tpu.memory_space<vmem>>, vector<16x32xf32>
    %1 = arith.truncf %0 : vector<16x32xf32> to vector<16x32xbf16>
    %c0_1 = arith.constant 0 : index
    %c0_2 = arith.constant 0 : index
    %2 = vector.load %arg7[%c0_1, %c0_2] : memref<16x64xbf16, #tpu.memory_space<vmem>>, vector<16x32xbf16>
    tpu.vector_store %arg7[%c0_1, %c0_2], %1 {strides = array<i32>} : memref<16x64xbf16, #tpu.memory_space<vmem>>, vector<16x32xbf16>,
    %c0_3 = arith.constant 0 : index
    %c0_4 = arith.constant 0 : index
    %3 = vector.load %arg3[%c0_3, %c0_4] : memref<16x32xf32, #tpu.memory_space<vmem>>, vector<16x32xf32>
    %4 = arith.truncf %3 : vector<16x32xf32> to vector<16x32xbf16>
    %c0_5 = arith.constant 0 : index
    %c32 = arith.constant 32 : index
    %5 = vector.load %arg7[%c0_5, %c32] : memref<16x64xbf16, #tpu.memory_space<vmem>>, vector<16x32xbf16>
    tpu.vector_store %arg7[%c0_5, %c32], %4 {strides = array<i32>} : memref<16x64xbf16, #tpu.memory_space<vmem>>, vector<16x32xbf16>,
    %c0_6 = arith.constant 0 : index
    %c0_7 = arith.constant 0 : index
    %6 = vector.load %arg7[%c0_6, %c0_7] : memref<16x64xbf16, #tpu.memory_space<vmem>>, vector<16x64xbf16>
    %c0_8 = arith.constant 0 : index
    %c0_9 = arith.constant 0 : index
    %7 = vector.load %arg4[%c0_8, %c0_9] : memref<64x32xbf16, #tpu.memory_space<vmem>>, vector<64x32xbf16>
    %cst = arith.constant dense<0.000000e+00> : vector<16x32xf32>
    %8 = tpu.matmul %6, %7, %cst {dimension_numbers = #tpu.dot_dimension_numbers<[1], [0], [0], [1], [0, 0, 1, 1], [], []>} : vector<16x64xbf16>, vector<64x32xbf16>, vector<16x32xf32> -> vector<16x32xf32>
    %c0_10 = arith.constant 0 : index
    %c0_11 = arith.constant 0 : index
    %9 = vector.load %arg5[%c0_10, %c0_11] : memref<1x32xf32, #tpu.memory_space<vmem>>, vector<1x32xf32>
    %10 = vector.broadcast %9 : vector<1x32xf32> to vector<16x32xf32>
    %11 = arith.addf %8, %10 : vector<16x32xf32>
    %c0_12 = arith.constant 0 : index
    %c0_13 = arith.constant 0 : index
    %12 = vector.load %arg6[%c0_12, %c0_13] : memref<16x32xf32, #tpu.memory_space<vmem>>, vector<16x32xf32>
    tpu.vector_store %arg6[%c0_12, %c0_13], %11 {strides = array<i32>} : memref<16x32xf32, #tpu.memory_space<vmem>>, vector<16x32xf32>,
    return
  }
  func.func @transform_0(%arg0: i32, %arg1: i32) -> (i32, i32) {
    %c0_i32 = arith.constant 0 : i32
    %c0_i32_0 = arith.constant 0 : i32
    return %arg1, %c0_i32 : i32, i32
  }
  func.func @transform_1(%arg0: i32, %arg1: i32) -> (i32, i32) {
    %c0_i32 = arith.constant 0 : i32
    %c0_i32_0 = arith.constant 0 : i32
    return %arg1, %c0_i32 : i32, i32
  }
  func.func @transform_2(%arg0: i32, %arg1: i32) -> (i32, i32) {
    %c0_i32 = arith.constant 0 : i32
    %c0_i32_0 = arith.constant 0 : i32
    return %c0_i32, %arg0 : i32, i32
  }
  func.func @transform_3(%arg0: i32, %arg1: i32) -> (i32, i32) {
    %c0_i32 = arith.constant 0 : i32
    %c0_i32_0 = arith.constant 0 : i32
    return %c0_i32, %arg0 : i32, i32
  }
  func.func @transform_4(%arg0: i32, %arg1: i32) -> (i32, i32) {
    %c0_i32 = arith.constant 0 : i32
    return %arg1, %arg0 : i32, i32
  }
}

</mosaic_0001>

<llo_original>
// kernel: tpu_custom_call.1
$region0: #{tpu_custom_call.1}
  #allocation0 [shape = 'u32[]', space=smem, size = 0x4, offset = 0x4, fixed_abs, tag = 'smem constant byte address 0x4 - core index']
  #allocation1 [shape = 'u32[72,128]{1,0:T(1,128)}', space=vmem, size = 0x9000, scoped, tag = 'internal scratch']
  #allocation2 [shape = 'bf16[16,64]{1,0:T(8,128)(2,1)}', space=vmem, size = 0x1000, scoped, tag = 'scratch operand']
  %s0 = inlined_call_operand.vmem [shape: f32[16,32], index: 0, kind: input, shape index: {}]
  %s1 = inlined_call_operand.vmem [shape: f32[16,32], index: 1, kind: input, shape index: {}]
  %s2 = inlined_call_operand.vmem [shape: bf16[64,32], index: 2, kind: input, shape index: {}]
  %s3 = inlined_call_operand.vmem [shape: f32[1,32], index: 3, kind: input, shape index: {}]
  %s4 = inlined_call_operand.hbm [shape: f32[16,32], index: 4, kind: output, shape index: {}]
  %s5 = sld [smem:[#allocation0]]
  $region26: #{tpu_custom_call.1} parent=0
    _
  %s7 = ssub.s32 1, %s5
  %s8 = scalar_select 0, %s7, %s5
  $region1: #{tpu_custom_call.1} parent=0
    #allocation3 [shape = 'u8[8192]{0}', space=vmem, size = 0x2000, scoped, tag = 'output window, operand 0, single buffered']
    #allocation4 [shape = 's32[1]{0}', space=sflag, size = 0x4, scoped, tag = 'scoped memory for tpu_custom_call.1']
    %9 = vsyncpa [#allocation4], 0
    // Predicated region
    $region2: #{tpu_custom_call.1} parent=1 // pred_check
      _
    $region3: #{tpu_custom_call.1} parent=1 // pred_check_branch
      %11 = sbr.rel (0) target = $region5
    $region4: #{tpu_custom_call.1} parent=1 // pred_region
      _
    $region5: #{tpu_custom_call.1} parent=1 // pred_fallthru
      _
    // Predicated region
    $region6: #{tpu_custom_call.1} parent=1 // pred_check
      _
    $region7: #{tpu_custom_call.1} parent=1 // pred_check_branch
      %13 = sbr.rel (0) target = $region9
    $region8: #{tpu_custom_call.1} parent=1 // pred_region
      _
    $region9: #{tpu_custom_call.1} parent=1 // pred_fallthru
      _
    // Predicated region
    $region10: #{tpu_custom_call.1} parent=1 // pred_check
      _
    $region11: #{tpu_custom_call.1} parent=1 // pred_check_branch
      %15 = sbr.rel (0) target = $region13
    $region12: #{tpu_custom_call.1} parent=1 // pred_region
      _
    $region13: #{tpu_custom_call.1} parent=1 // pred_fallthru
      _
    // Predicated region
    $region14: #{tpu_custom_call.1} parent=1 // pred_check
      _
    $region15: #{tpu_custom_call.1} parent=1 // pred_check_branch
      %17 = sbr.rel (0) target = $region17
    $region16: #{tpu_custom_call.1} parent=1 // pred_region
      _
    $region17: #{tpu_custom_call.1} parent=1 // pred_fallthru
      _
    %v19 = vld [vmem:[%s0] sm:$0xff]
    %v20 = vld [vmem:[%s0 + $0x8] sm:$0xff]
    %v21 = vpack.c.bf16 %v19, %v19
    %v22 = vpack.c.bf16 %v20, %v20
    %vm23 = vcmask 257024
    %24 = vst.msk [vmem:[#allocation2] sm:$0xf] %vm23, %v21
    %25 = vst.msk [vmem:[#allocation2 + $0x4] sm:$0xf] %vm23, %v22
    %v26 = vld [vmem:[%s1] sm:$0xff]
    %v27 = vld [vmem:[%s1 + $0x8] sm:$0xff]
    %v28 = vpack.c.bf16 %v26, %v26
    %v29 = vpack.c.bf16 %v27, %v27
    %32 = vrot.lane.b32.xlu0 %v28, 32
    %v33 = vpop.permute.xlu0 %32
    %34 = vrot.lane.b32.xlu0 %v29, 32
    %v35 = vpop.permute.xlu0 %34
    %vm38 = vcmask 519424
    %39 = vst.msk [vmem:[#allocation2] sm:$0xf] %vm38, %v33
    %40 = vst.msk [vmem:[#allocation2 + $0x4] sm:$0xf] %vm38, %v35
    %v41 = vld [vmem:[#allocation2] sm:$0xf]
    %v42 = vld [vmem:[#allocation2 + $0x4] sm:$0xf]
    %v43 = vld [vmem:[%s2] sm:$0xf]
    %v44 = vld [vmem:[%s2 + $0x4] sm:$0xf]
    %v45 = vld [vmem:[%s2 + $0x8] sm:$0xf]
    %v46 = vld [vmem:[%s2 + $0xc] sm:$0xf]
    %v47 = vld [vmem:[%s2 + $0x10] sm:$0xf]
    %v48 = vld [vmem:[%s2 + $0x14] sm:$0xf]
    %v49 = vld [vmem:[%s2 + $0x18] sm:$0xf]
    %v50 = vld [vmem:[%s2 + $0x1c] sm:$0xf]
    %v51 = vld [vmem:[%s3] sm:$0x1]
    %v53 = vperm.slane %v51, 0
    %v57 = vunpack.c.l.b16 %v41
    %v58 = vunpack.c.l.b16 %v42
    %v59 = vpack.c.b16 %v58, %v57
    %v68 = vunpack.c.l.b16 %v43
    %v69 = vunpack.c.l.b16 %v44
    %v70 = vunpack.c.l.b16 %v45
    %v71 = vunpack.c.l.b16 %v46
    %v72 = vunpack.c.l.b16 %v47
    %v73 = vunpack.c.l.b16 %v48
    %v74 = vunpack.c.l.b16 %v49
    %v75 = vunpack.c.l.b16 %v50
    %v76 = vpack.c.b16 %v69, %v68
    %v77 = vpack.c.b16 %v71, %v70
    %v78 = vpack.c.b16 %v73, %v72
    %v79 = vpack.c.b16 %v75, %v74
    %vm84 = vcmask 523264
    %v86 = vsel %vm84, %v59, 0
    %88 = vmatpush.bf16.msra.mxu0 0
    %89 = vmatpush.bf16.msra.mxu0 0
    %90 = vmatpush.bf16.msra.mxu0 0
    %91 = vmatpush.bf16.msra.mxu0 0
    %92 = vmatpush.bf16.msra.mxu0 %v79
    %93 = vmatpush.bf16.msra.mxu0 %v78
    %94 = vmatpush.bf16.msra.mxu0 %v77
    %95 = vmatpush.bf16.msra.mxu0 %v76
    %96 = vmatmul.bf16.gmra.mxu0 %v86
    %v97 = vpop.f32.mrf.mxu0
    %v98 = vadd.f32 %v53, %v97
    %v99 = vpop.f32.mrf.mxu0
    %v100 = vadd.f32 %v53, %v99
    %101 = vdwg.mxu0
    %vm102 = vcmask 261120
    %103 = vst.msk [vmem:[#allocation3] sm:$0xff] %vm102, %v98
    %104 = vst.msk [vmem:[#allocation3 + $0x8] sm:$0xff] %vm102, %v100
    // Predicated region
    $region18: #{tpu_custom_call.1} parent=1 // pred_check
      _
    $region19: #{tpu_custom_call.1} parent=1 // pred_check_branch
      %106 = sbr.rel (0) target = $region21
    $region20: #{tpu_custom_call.1} parent=1 // pred_region
      %108 = vsyncadd [#allocation4], 0
      %s109 = sshll.u32 [#allocation3], 4
      %s110 = int_to_ptr.vmem [resolvable:$true] %s109
      %s111 = sshll.u32 %s4, 4
      %s112 = int_to_ptr.hbm [resolvable:$true] %s111
      %117 = dma.vmem_to_hbm [thread:$0]  %s110, 256, %s112, [#allocation4], 128, 128, 8
    $region21: #{tpu_custom_call.1} parent=1 // pred_fallthru
      _
    // Predicated region
    $region22: #{tpu_custom_call.1} parent=1 // pred_check
      _
    $region23: #{tpu_custom_call.1} parent=1 // pred_check_branch
      %119 = sbr.rel (0) target = $region25
    $region24: #{tpu_custom_call.1} parent=1 // pred_region
      %121 = dma.done [#allocation4], 256
    $region25: #{tpu_custom_call.1} parent=1 // pred_fallthru
      _
    %122 = vsyncpa [#allocation4], 1

// kernel: tpu_custom_call.1
$region0: #{tpu_custom_call.1}
  #allocation0 [shape = 'u32[]', space=smem, size = 0x4, offset = 0x4, fixed_abs, tag = 'smem constant byte address 0x4 - core index']
  #allocation1 [shape = 'u32[72,128]{1,0:T(1,128)}', space=vmem, size = 0x9000, scoped, tag = 'internal scratch']
  #allocation2 [shape = 'bf16[16,64]{1,0:T(8,128)(2,1)}', space=vmem, size = 0x1000, scoped, tag = 'scratch operand']
  %s0 = inlined_call_operand.vmem [shape: f32[16,32], index: 0, kind: input, shape index: {}]
  %s1 = inlined_call_operand.vmem [shape: f32[16,32], index: 1, kind: input, shape index: {}]
  %s2 = inlined_call_operand.vmem [shape: bf16[64,32], index: 2, kind: input, shape index: {}]
  %s3 = inlined_call_operand.vmem [shape: f32[1,32], index: 3, kind: input, shape index: {}]
  %s4 = inlined_call_operand.hbm [shape: f32[16,32], index: 4, kind: output, shape index: {}]
  %s5 = sld [smem:[#allocation0]]
  $region26: #{tpu_custom_call.1} parent=0
    _
  %s7 = ssub.s32 1, %s5
  %s8 = scalar_select 0, %s7, %s5
  $region1: #{tpu_custom_call.1} parent=0
    #allocation3 [shape = 'u8[8192]{0}', space=vmem, size = 0x2000, scoped, tag = 'output window, operand 0, single buffered']
    #allocation4 [shape = 's32[1]{0}', space=sflag, size = 0x4, scoped, tag = 'scoped memory for tpu_custom_call.1']
    %9 = vsyncpa [#allocation4], 0
    // Predicated region
    $region2: #{tpu_custom_call.1} parent=1 // pred_check
      _
    $region3: #{tpu_custom_call.1} parent=1 // pred_check_branch
      %11 = sbr.rel (0) target = $region5
    $region4: #{tpu_custom_call.1} parent=1 // pred_region
      _
    $region5: #{tpu_custom_call.1} parent=1 // pred_fallthru
      _
    // Predicated region
    $region6: #{tpu_custom_call.1} parent=1 // pred_check
      _
    $region7: #{tpu_custom_call.1} parent=1 // pred_check_branch
      %13 = sbr.rel (0) target = $region9
    $region8: #{tpu_custom_call.1} parent=1 // pred_region
      _
    $region9: #{tpu_custom_call.1} parent=1 // pred_fallthru
      _
    // Predicated region
    $region10: #{tpu_custom_call.1} parent=1 // pred_check
      _
    $region11: #{tpu_custom_call.1} parent=1 // pred_check_branch
      %15 = sbr.rel (0) target = $region13
    $region12: #{tpu_custom_call.1} parent=1 // pred_region
      _
    $region13: #{tpu_custom_call.1} parent=1 // pred_fallthru
      _
    // Predicated region
    $region14: #{tpu_custom_call.1} parent=1 // pred_check
      _
    $region15: #{tpu_custom_call.1} parent=1 // pred_check_branch
      %17 = sbr.rel (0) target = $region17
    $region16: #{tpu_custom_call.1} parent=1 // pred_region
      _
    $region17: #{tpu_custom_call.1} parent=1 // pred_fallthru
      _
    %v19 = vld [vmem:[%s0] sm:$0xff]
    %v20 = vld [vmem:[%s0 + $0x8] sm:$0xff]
    %v21 = vpack.c.bf16 %v19, %v19
    %v22 = vpack.c.bf16 %v20, %v20
    %vm23 = vcmask 257024
    %24 = vst.msk [vmem:[#allocation2] sm:$0xf] %vm23, %v21
    %25 = vst.msk [vmem:[#allocation2 + $0x4] sm:$0xf] %vm23, %v22
    %v26 = vld [vmem:[%s1] sm:$0xff]
    %v27 = vld [vmem:[%s1 + $0x8] sm:$0xff]
    %v28 = vpack.c.bf16 %v26, %v26
    %v29 = vpack.c.bf16 %v27, %v27
    %32 = vrot.lane.b32.xlu0 %v28, 32
    %v33 = vpop.permute.xlu0 %32
    %34 = vrot.lane.b32.xlu0 %v29, 32
    %v35 = vpop.permute.xlu0 %34
    %vm38 = vcmask 519424
    %39 = vst.msk [vmem:[#allocation2] sm:$0xf] %vm38, %v33
    %40 = vst.msk [vmem:[#allocation2 + $0x4] sm:$0xf] %vm38, %v35
    %v41 = vld [vmem:[#allocation2] sm:$0xf]
    %v42 = vld [vmem:[#allocation2 + $0x4] sm:$0xf]
    %v43 = vld [vmem:[%s2] sm:$0xf]
    %v44 = vld [vmem:[%s2 + $0x4] sm:$0xf]
    %v45 = vld [vmem:[%s2 + $0x8] sm:$0xf]
    %v46 = vld [vmem:[%s2 + $0xc] sm:$0xf]
    %v47 = vld [vmem:[%s2 + $0x10] sm:$0xf]
    %v48 = vld [vmem:[%s2 + $0x14] sm:$0xf]
    %v49 = vld [vmem:[%s2 + $0x18] sm:$0xf]
    %v50 = vld [vmem:[%s2 + $0x1c] sm:$0xf]
    %v51 = vld [vmem:[%s3] sm:$0x1]
    %v53 = vperm.slane %v51, 0
    %v57 = vunpack.c.l.b16 %v41
    %v58 = vunpack.c.l.b16 %v42
    %v59 = vpack.c.b16 %v58, %v57
    %v68 = vunpack.c.l.b16 %v43
    %v69 = vunpack.c.l.b16 %v44
    %v70 = vunpack.c.l.b16 %v45
    %v71 = vunpack.c.l.b16 %v46
    %v72 = vunpack.c.l.b16 %v47
    %v73 = vunpack.c.l.b16 %v48
    %v74 = vunpack.c.l.b16 %v49
    %v75 = vunpack.c.l.b16 %v50
    %v76 = vpack.c.b16 %v69, %v68
    %v77 = vpack.c.b16 %v71, %v70
    %v78 = vpack.c.b16 %v73, %v72
    %v79 = vpack.c.b16 %v75, %v74
    %vm84 = vcmask 523264
    %v86 = vsel %vm84, %v59, 0
    %88 = vmatpush.bf16.msra.mxu0 0
    %89 = vmatpush.bf16.msra.mxu0 0
    %90 = vmatpush.bf16.msra.mxu0 0
    %91 = vmatpush.bf16.msra.mxu0 0
    %92 = vmatpush.bf16.msra.mxu0 %v79
    %93 = vmatpush.bf16.msra.mxu0 %v78
    %94 = vmatpush.bf16.msra.mxu0 %v77
    %95 = vmatpush.bf16.msra.mxu0 %v76
    %96 = vmatmul.bf16.gmra.mxu0 %v86
    %v97 = vpop.f32.mrf.mxu0
    %v98 = vadd.f32 %v53, %v97
    %v99 = vpop.f32.mrf.mxu0
    %v100 = vadd.f32 %v53, %v99
    %101 = vdwg.mxu0
    %vm102 = vcmask 261120
    %103 = vst.msk [vmem:[#allocation3] sm:$0xff] %vm102, %v98
    %104 = vst.msk [vmem:[#allocation3 + $0x8] sm:$0xff] %vm102, %v100
    // Predicated region
    $region18: #{tpu_custom_call.1} parent=1 // pred_check
      _
    $region19: #{tpu_custom_call.1} parent=1 // pred_check_branch
      %106 = sbr.rel (0) target = $region21
    $region20: #{tpu_custom_call.1} parent=1 // pred_region
      %108 = vsyncadd [#allocation4], 0
      %s109 = sshll.u32 [#allocation3], 4
      %s110 = int_to_ptr.vmem [resolvable:$true] %s109
      %s111 = sshll.u32 %s4, 4
      %s112 = int_to_ptr.hbm [resolvable:$true] %s111
      %117 = dma.vmem_to_hbm [thread:$0]  %s110, 256, %s112, [#allocation4], 128, 128, 8
    $region21: #{tpu_custom_call.1} parent=1 // pred_fallthru
      _
    // Predicated region
    $region22: #{tpu_custom_call.1} parent=1 // pred_check
      _
    $region23: #{tpu_custom_call.1} parent=1 // pred_check_branch
      %119 = sbr.rel (0) target = $region25
    $region24: #{tpu_custom_call.1} parent=1 // pred_region
      %121 = dma.done [#allocation4], 256
    $region25: #{tpu_custom_call.1} parent=1 // pred_fallthru
      _
    %122 = vsyncpa [#allocation4], 1

</llo_original>
